<compile_context>
chip_gen: v7x
topology: tpu7x:2x2x1
jax: 0.10.0
libtpu: 0.0.40
codegen_flags: <defaults>
</compile_context>

<pallas_src>
import functools

import jax
import jax.numpy as jnp
from jax.experimental import pallas as pl
from jax.experimental.pallas import tpu as pltpu  # noqa: F401  (kept for TPU-specific extensions)

BN_EPS = 1e-5
_LANE = 128


def _round_up(n, m):
    return ((n + m - 1) // m) * m


# ----------------------------------------------------------------------------
# Kernel
# ----------------------------------------------------------------------------
def _actor_kernel(x_ref, w1_ref, bn1_ref, w2_ref, w3_ref, b23_ref, o_ref,
                  *, f2p, ap, inv_n):
    """Fused fc1 -> ReLU -> BatchNorm1d -> fc2 -> ReLU -> fc3 -> tanh."""
    # ---- fc1 (bf16 operands, f32 MXU accumulation) + bias + ReLU -----------
    h1 = jnp.dot(x_ref[...], w1_ref[...], preferred_element_type=jnp.float32)
    bn1 = bn1_ref[...]                        # (3, F1p) f32: [b1; gamma; beta]
    h1 = jnp.maximum(h1 + bn1[0:1, :], 0.0)   # (B, F1p) f32

    # ---- BatchNorm1d, training-mode (biased) batch statistics --------------
    # Single pass: s1 = sum(x), s2 = sum(x*x); var = E[x^2] - E[x]^2.
    s1 = jnp.sum(h1, axis=0, keepdims=True)
    s2 = jnp.sum(h1 * h1, axis=0, keepdims=True)
    mean = s1 * inv_n
    var = jnp.maximum(s2 * inv_n - mean * mean, 0.0)   # guard tiny negatives
    inv_std = jax.lax.rsqrt(var + BN_EPS)              # EUP
    h1 = bn1[1:2, :] * ((h1 - mean) * inv_std) + bn1[2:3, :]

    # ---- fc2 + ReLU ----------------------------------------------------------
    h2 = jnp.dot(h1.astype(w2_ref.dtype), w2_ref[...],
                 preferred_element_type=jnp.float32)
    h2 = jnp.maximum(h2 + b23_ref[0:1, :f2p], 0.0)     # (B, F2p) f32

    # ---- fc3 + tanh (lane-dense (B, Ap) output slab) -------------------------
    h3 = jnp.dot(h2.astype(w3_ref.dtype), w3_ref[...],
                 preferred_element_type=jnp.float32)
    o_ref[...] = jnp.tanh(h3 + b23_ref[1:2, :ap]).astype(o_ref.dtype)


# ----------------------------------------------------------------------------
# One-time parameter packing (pad to lane width, cast matmul weights, merge
# small vectors into slabs -> fewer DMAs per forward)
# ----------------------------------------------------------------------------
def pack_actor_params(params, matmul_dtype=jnp.bfloat16):
    w1, w2, w3 = params["w1"], params["w2"], params["w3"]
    s, f1 = w1.shape
    f2, a = w2.shape[1], w3.shape[1]
    kp, f1p, f2p, ap = (_round_up(d, _LANE) for d in (s, f1, f2, a))
    fm = max(f2p, ap)

    def pad2(arr, rows, cols):
        return jnp.pad(arr, ((0, rows - arr.shape[0]), (0, cols - arr.shape[1])))

    return {
        "w1": pad2(w1, kp, f1p).astype(matmul_dtype),
        "w2": pad2(w2, f1p, f2p).astype(matmul_dtype),
        "w3": pad2(w3, f2p, ap).astype(matmul_dtype),
        # [b1; gamma; beta] in a single (3, F1p) f32 slab (one DMA).
        "bn1": jnp.concatenate(
            [pad2(params["b1"], 1, f1p),
             pad2(params["gamma"], 1, f1p),
             pad2(params["beta"], 1, f1p)], axis=0).astype(jnp.float32),
        # [b2; b3] in a single (2, max(F2p, Ap)) f32 slab (one DMA).
        "b23": jnp.concatenate(
            [pad2(params["b2"], 1, fm),
             pad2(params["b3"], 1, fm)], axis=0).astype(jnp.float32),
    }


# ----------------------------------------------------------------------------
# Forward wrapper
# ----------------------------------------------------------------------------
@functools.partial(jax.jit, static_argnames=("action_size",))
def actor_forward(state, packed, *, action_size):
    """state: (B, state_size) f32.  packed: output of pack_actor_params."""
    if state.ndim == 1:                  # mirrors torch.unsqueeze(state, 0)
        state = state[None, :]
    b = state.shape[0]
    kp = packed["w1"].shape[0]
    f2p = packed["w2"].shape[1]
    ap = packed["w3"].shape[1]

    # Lane-dense state tile in the MXU dtype (zero-pad K to the packed w1 dim).
    xp = jnp.pad(state, ((0, 0), (0, kp - state.shape[1])))
    xp = xp.astype(packed["w1"].dtype)

    kernel = functools.partial(_actor_kernel, f2p=f2p, ap=ap, inv_n=1.0 / b)
    full = lambda shape: pl.BlockSpec(shape, lambda: (0,) * len(shape))

    out = pl.pallas_call(
        kernel,
        out_shape=jax.ShapeDtypeStruct((b, ap), jnp.float32),
        # BatchNorm reduces over the batch axis, so the full batch stays in one
        # block; everything fits VMEM at these sizes on v5e/v6e/v7x.
        grid=(),
        in_specs=[full(xp.shape), full(packed["w1"].shape),
                  full(packed["bn1"].shape), full(packed["w2"].shape),
                  full(packed["w3"].shape), full(packed["b23"].shape)],
        out_specs=full((b, ap)),
    )(xp, packed["w1"], packed["bn1"], packed["w2"], packed["w3"], packed["b23"])

    return out[:, :action_size]


# ----------------------------------------------------------------------------
# Init (mirrors Actor.reset_parameters: hidden_init uses weight.size()[0],
# i.e. out_features, for the fan_in limit; biases keep nn.Linear defaults)
# ----------------------------------------------------------------------------
def init_actor_params(key, state_size, action_size, fc1_units, fc2_units):
    k = jax.random.split(key, 6)
    lim1 = 1.0 / jnp.sqrt(jnp.float32(fc1_units))
    lim2 = 1.0 / jnp.sqrt(jnp.float32(fc2_units))
    blim1 = 1.0 / jnp.sqrt(jnp.float32(state_size))
    blim2 = 1.0 / jnp.sqrt(jnp.float32(fc1_units))
    blim3 = 1.0 / jnp.sqrt(jnp.float32(fc2_units))
    return {
        "w1": jax.random.uniform(k[0], (state_size, fc1_units), jnp.float32, -lim1, lim1),
        "b1": jax.random.uniform(k[1], (1, fc1_units), jnp.float32, -blim1, blim1),
        "gamma": jnp.ones((1, fc1_units), jnp.float32),
        "beta": jnp.zeros((1, fc1_units), jnp.float32),
        "w2": jax.random.uniform(k[2], (fc1_units, fc2_units), jnp.float32, -lim2, lim2),
        "b2": jax.random.uniform(k[3], (1, fc2_units), jnp.float32, -blim2, blim2),
        "w3": jax.random.uniform(k[4], (fc2_units, action_size), jnp.float32, -0.003, 0.003),
        "b3": jax.random.uniform(k[5], (1, action_size), jnp.float32, -blim3, blim3),
    }


# ----------------------------------------------------------------------------
# Pure-JAX reference (optionally with the same bf16 matmul operands)
# ----------------------------------------------------------------------------
def actor_forward_ref(state, params, matmul_dtype=jnp.float32):
    c = lambda arr: arr.astype(matmul_dtype)
    dot = lambda a, b: jnp.dot(c(a), c(b), preferred_element_type=jnp.float32)
    h1 = jnp.maximum(dot(state, params["w1"]) + params["b1"], 0.0)
    mean = h1.mean(axis=0, keepdims=True)
    var = ((h1 - mean) ** 2).mean(axis=0, keepdims=True)
    h1 = params["gamma"] * (h1 - mean) * jax.lax.rsqrt(var + BN_EPS) + params["beta"]
    h2 = jnp.maximum(dot(h1, params["w2"]) + params["b2"], 0.0)
    return jnp.tanh(dot(h2, params["w3"]) + params["b3"])


if __name__ == "__main__":
    # Small shapes consistent with the module (state -> fc1 -> bn1 -> fc2 -> action).
    B, STATE, ACTION, FC1, FC2 = 8, 32, 8, 128, 128

    key = jax.random.PRNGKey(0)
    pkey, skey, gkey, bkey = jax.random.split(key, 4)
    params = init_actor_params(pkey, STATE, ACTION, FC1, FC2)
    # PyTorch BatchNorm1d initializes gamma=1, beta=0; perturb them here so the
    # correctness check also exercises the BN affine path.
    params["gamma"] = jax.random.uniform(gkey, (1, FC1), jnp.float32, 0.5, 1.5)
    params["beta"] = jax.random.uniform(bkey, (1, FC1), jnp.float32, -0.1, 0.1)
    state = jax.random.normal(skey, (B, STATE), jnp.float32)

    packed = pack_actor_params(params, matmul_dtype=jnp.bfloat16)
    out = jax.block_until_ready(actor_forward(state, packed, action_size=ACTION))
    assert out.shape == (B, ACTION)

    # Check against a reference using the same bf16 matmul operands (tight) and
    # against the pure-f32 reference (loose, bounds the bf16 quantization).
    ref_bf16 = actor_forward_ref(state, params, matmul_dtype=jnp.bfloat16)
    ref_f32 = actor_forward_ref(state, params, matmul_dtype=jnp.float32)
    assert jnp.allclose(out, ref_bf16, atol=2e-3, rtol=0.0), \
        float(jnp.max(jnp.abs(out - ref_bf16)))
    assert jnp.allclose(out, ref_f32, atol=1e-2, rtol=0.0), \
        float(jnp.max(jnp.abs(out - ref_f32)))
    print("KERNEL_OK")
</pallas_src>

<mosaic_0001>
module attributes {stable_mosaic.version = 11 : i64} {
  func.func @_actor_kernel(%arg0: memref<8x128xbf16, #tpu.memory_space<vmem>>, %arg1: memref<128x128xbf16, #tpu.memory_space<vmem>>, %arg2: memref<3x128xf32, #tpu.memory_space<vmem>>, %arg3: memref<128x128xbf16, #tpu.memory_space<vmem>>, %arg4: memref<128x128xbf16, #tpu.memory_space<vmem>>, %arg5: memref<2x128xf32, #tpu.memory_space<vmem>>, %arg6: memref<8x128xf32, #tpu.memory_space<vmem>>) attributes {dimension_semantics = [], scalar_prefetch = 0 : i64, scratch_operands = 0 : i64, tpu.core_type = #tpu.core_type<tc>} {
    %c0 = arith.constant 0 : index
    %c0_0 = arith.constant 0 : index
    %0 = vector.load %arg0[%c0, %c0_0] : memref<8x128xbf16, #tpu.memory_space<vmem>>, vector<8x128xbf16>
    %c0_1 = arith.constant 0 : index
    %c0_2 = arith.constant 0 : index
    %1 = vector.load %arg1[%c0_1, %c0_2] : memref<128x128xbf16, #tpu.memory_space<vmem>>, vector<128x128xbf16>
    %cst = arith.constant dense<0.000000e+00> : vector<8x128xf32>
    %2 = tpu.matmul %0, %1, %cst {dimension_numbers = #tpu.dot_dimension_numbers<[1], [0], [0], [1], [0, 0, 1, 1], [], []>} : vector<8x128xbf16>, vector<128x128xbf16>, vector<8x128xf32> -> vector<8x128xf32>
    %c0_3 = arith.constant 0 : index
    %c0_4 = arith.constant 0 : index
    %3 = vector.load %arg2[%c0_3, %c0_4] : memref<3x128xf32, #tpu.memory_space<vmem>>, vector<3x128xf32>
    %4 = vector.extract_strided_slice %3 {offsets = [0, 0], sizes = [1, 128], strides = [1, 1]} : vector<3x128xf32> to vector<1x128xf32>
    %5 = vector.broadcast %4 : vector<1x128xf32> to vector<8x128xf32>
    %6 = arith.addf %2, %5 : vector<8x128xf32>
    %cst_5 = arith.constant 0.000000e+00 : f32
    %7 = vector.broadcast %cst_5 : f32 to vector<8x128xf32>
    %8 = arith.maximumf %6, %7 : vector<8x128xf32>
    %cst_6 = arith.constant dense<0.000000e+00> : vector<128xf32>
    %9 = vector.multi_reduction <add>, %8, %cst_6 [0] : vector<8x128xf32> to vector<128xf32>
    %10 = vector.shape_cast %9 : vector<128xf32> to vector<1x128xf32>
    %11 = arith.mulf %8, %8 : vector<8x128xf32>
    %cst_7 = arith.constant dense<0.000000e+00> : vector<128xf32>
    %12 = vector.multi_reduction <add>, %11, %cst_7 [0] : vector<8x128xf32> to vector<128xf32>
    %13 = vector.shape_cast %12 : vector<128xf32> to vector<1x128xf32>
    %cst_8 = arith.constant 1.250000e-01 : f32
    %14 = vector.broadcast %cst_8 : f32 to vector<1x128xf32>
    %15 = arith.mulf %10, %14 : vector<1x128xf32>
    %cst_9 = arith.constant 1.250000e-01 : f32
    %16 = vector.broadcast %cst_9 : f32 to vector<1x128xf32>
    %17 = arith.mulf %13, %16 : vector<1x128xf32>
    %18 = arith.mulf %15, %15 : vector<1x128xf32>
    %19 = arith.subf %17, %18 : vector<1x128xf32>
    %cst_10 = arith.constant 0.000000e+00 : f32
    %20 = vector.broadcast %cst_10 : f32 to vector<1x128xf32>
    %21 = arith.maximumf %19, %20 : vector<1x128xf32>
    %cst_11 = arith.constant 9.99999974E-6 : f32
    %22 = vector.broadcast %cst_11 : f32 to vector<1x128xf32>
    %23 = arith.addf %21, %22 : vector<1x128xf32>
    %24 = math.rsqrt %23 : vector<1x128xf32>
    %25 = vector.extract_strided_slice %3 {offsets = [1, 0], sizes = [1, 128], strides = [1, 1]} : vector<3x128xf32> to vector<1x128xf32>
    %26 = vector.broadcast %15 : vector<1x128xf32> to vector<8x128xf32>
    %27 = arith.subf %8, %26 : vector<8x128xf32>
    %28 = vector.broadcast %24 : vector<1x128xf32> to vector<8x128xf32>
    %29 = arith.mulf %27, %28 : vector<8x128xf32>
    %30 = vector.broadcast %25 : vector<1x128xf32> to vector<8x128xf32>
    %31 = arith.mulf %30, %29 : vector<8x128xf32>
    %32 = vector.extract_strided_slice %3 {offsets = [2, 0], sizes = [1, 128], strides = [1, 1]} : vector<3x128xf32> to vector<1x128xf32>
    %33 = vector.broadcast %32 : vector<1x128xf32> to vector<8x128xf32>
    %34 = arith.addf %31, %33 : vector<8x128xf32>
    %35 = arith.truncf %34 : vector<8x128xf32> to vector<8x128xbf16>
    %c0_12 = arith.constant 0 : index
    %c0_13 = arith.constant 0 : index
    %36 = vector.load %arg3[%c0_12, %c0_13] : memref<128x128xbf16, #tpu.memory_space<vmem>>, vector<128x128xbf16>
    %cst_14 = arith.constant dense<0.000000e+00> : vector<8x128xf32>
    %37 = tpu.matmul %35, %36, %cst_14 {dimension_numbers = #tpu.dot_dimension_numbers<[1], [0], [0], [1], [0, 0, 1, 1], [], []>} : vector<8x128xbf16>, vector<128x128xbf16>, vector<8x128xf32> -> vector<8x128xf32>
    %c0_15 = arith.constant 0 : index
    %c0_16 = arith.constant 0 : index
    %38 = vector.load %arg5[%c0_15, %c0_16] : memref<2x128xf32, #tpu.memory_space<vmem>>, vector<1x128xf32>
    %39 = vector.broadcast %38 : vector<1x128xf32> to vector<8x128xf32>
    %40 = arith.addf %37, %39 : vector<8x128xf32>
    %cst_17 = arith.constant 0.000000e+00 : f32
    %41 = vector.broadcast %cst_17 : f32 to vector<8x128xf32>
    %42 = arith.maximumf %40, %41 : vector<8x128xf32>
    %43 = arith.truncf %42 : vector<8x128xf32> to vector<8x128xbf16>
    %c0_18 = arith.constant 0 : index
    %c0_19 = arith.constant 0 : index
    %44 = vector.load %arg4[%c0_18, %c0_19] : memref<128x128xbf16, #tpu.memory_space<vmem>>, vector<128x128xbf16>
    %cst_20 = arith.constant dense<0.000000e+00> : vector<8x128xf32>
    %45 = tpu.matmul %43, %44, %cst_20 {dimension_numbers = #tpu.dot_dimension_numbers<[1], [0], [0], [1], [0, 0, 1, 1], [], []>} : vector<8x128xbf16>, vector<128x128xbf16>, vector<8x128xf32> -> vector<8x128xf32>
    %c1 = arith.constant 1 : index
    %c0_21 = arith.constant 0 : index
    %46 = vector.load %arg5[%c1, %c0_21] : memref<2x128xf32, #tpu.memory_space<vmem>>, vector<1x128xf32>
    %47 = vector.broadcast %46 : vector<1x128xf32> to vector<8x128xf32>
    %48 = arith.addf %45, %47 : vector<8x128xf32>
    %49 = math.tanh %48 : vector<8x128xf32>
    %c0_22 = arith.constant 0 : index
    %c0_23 = arith.constant 0 : index
    %50 = vector.load %arg6[%c0_22, %c0_23] : memref<8x128xf32, #tpu.memory_space<vmem>>, vector<8x128xf32>
    tpu.vector_store %arg6[%c0_22, %c0_23], %49 {strides = array<i32>} : memref<8x128xf32, #tpu.memory_space<vmem>>, vector<8x128xf32>,
    return
  }
}

</mosaic_0001>

<llo_original>
// kernel: actor_forward.1
$region0: #{actor_forward.1}
  #allocation0 [shape = 'u32[]', space=smem, size = 0x4, offset = 0x4, fixed_abs, tag = 'smem constant byte address 0x4 - core index']
  #allocation1 [shape = 'u32[144,128]{1,0:T(1,128)}', space=vmem, size = 0x12000, scoped, tag = 'internal scratch']
  %s0 = inlined_call_operand.vmem [shape: bf16[8,128], index: 0, kind: input, shape index: {}]
  %s1 = inlined_call_operand.hbm [shape: bf16[128,128], index: 1, kind: input, shape index: {}]
  %s2 = inlined_call_operand.vmem [shape: f32[3,128], index: 2, kind: input, shape index: {}]
  %s3 = inlined_call_operand.hbm [shape: bf16[128,128], index: 3, kind: input, shape index: {}]
  %s4 = inlined_call_operand.hbm [shape: bf16[128,128], index: 4, kind: input, shape index: {}]
  %s5 = inlined_call_operand.vmem [shape: f32[2,128], index: 5, kind: input, shape index: {}]
  %s6 = inlined_call_operand.hbm [shape: f32[8,128], index: 6, kind: output, shape index: {}]
  %s7 = sld [smem:[#allocation0]]
  $region46: #{actor_forward.1} parent=0
    _
  %s9 = ssub.s32 1, %s7
  %s10 = scalar_select 0, %s9, %s7
  $region1: #{actor_forward.1} parent=0
    #allocation2 [shape = 'u8[32768]{0}', space=vmem, size = 0x8000, scoped, tag = 'input window, operand 1, single buffered']
    #allocation3 [shape = 's32[1]{0}', space=sflag, size = 0x4, scoped, tag = 'scoped memory for actor_forward.1']
    #allocation4 [shape = 's32[1]{0}', space=sflag, size = 0x4, scoped, tag = 'scoped memory for actor_forward.1']
    #allocation5 [shape = 'u8[32768]{0}', space=vmem, size = 0x8000, scoped, tag = 'input window, operand 3, single buffered']
    #allocation6 [shape = 's32[1]{0}', space=sflag, size = 0x4, scoped, tag = 'scoped memory for actor_forward.1']
    #allocation7 [shape = 'u8[32768]{0}', space=vmem, size = 0x8000, scoped, tag = 'input window, operand 4, single buffered']
    #allocation8 [shape = 'u8[4096]{0}', space=vmem, size = 0x1000, scoped, tag = 'output window, operand 0, single buffered']
    %11 = vsyncpa [#allocation3], 0
    %12 = vsyncpa [#allocation6], 0
    %13 = vsyncpa [#allocation4], 0
    // Predicated region
    $region2: #{actor_forward.1} parent=1 // pred_check
      _
    $region3: #{actor_forward.1} parent=1 // pred_check_branch
      %15 = sbr.rel (0) target = $region5
    $region4: #{actor_forward.1} parent=1 // pred_region
      _
    $region5: #{actor_forward.1} parent=1 // pred_fallthru
      _
    // Predicated region
    $region6: #{actor_forward.1} parent=1 // pred_check
      _
    $region7: #{actor_forward.1} parent=1 // pred_check_branch
      %17 = sbr.rel (0) target = $region9
    $region8: #{actor_forward.1} parent=1 // pred_region
      %s19 = ssub.s32 1024, 1024
      %20 = vsyncadd [#allocation3], %s19
      %s21 = sshll.u32 [#allocation2], 4
      %s22 = int_to_ptr.vmem [resolvable:$true] %s21
      %27 = dma.hbm_to_vmem [thread:$0]  %s1, 1024, %s22, [#allocation3], 64, 64, 4
    $region9: #{actor_forward.1} parent=1 // pred_fallthru
      _
    // Predicated region
    $region10: #{actor_forward.1} parent=1 // pred_check
      _
    $region11: #{actor_forward.1} parent=1 // pred_check_branch
      %29 = sbr.rel (0) target = $region13
    $region12: #{actor_forward.1} parent=1 // pred_region
      _
    $region13: #{actor_forward.1} parent=1 // pred_fallthru
      _
    // Predicated region
    $region14: #{actor_forward.1} parent=1 // pred_check
      _
    $region15: #{actor_forward.1} parent=1 // pred_check_branch
      %31 = sbr.rel (0) target = $region17
    $region16: #{actor_forward.1} parent=1 // pred_region
      %s33 = ssub.s32 1024, 1024
      %34 = vsyncadd [#allocation6], %s33
      %s35 = sshll.u32 [#allocation5], 4
      %s36 = int_to_ptr.vmem [resolvable:$true] %s35
      %41 = dma.hbm_to_vmem [thread:$0]  %s3, 1024, %s36, [#allocation6], 64, 64, 4
    $region17: #{actor_forward.1} parent=1 // pred_fallthru
      _
    // Predicated region
    $region18: #{actor_forward.1} parent=1 // pred_check
      _
    $region19: #{actor_forward.1} parent=1 // pred_check_branch
      %43 = sbr.rel (0) target = $region21
    $region20: #{actor_forward.1} parent=1 // pred_region
      %s45 = ssub.s32 1024, 1024
      %46 = vsyncadd [#allocation6], %s45
      %s47 = sshll.u32 [#allocation7], 4
      %s48 = int_to_ptr.vmem [resolvable:$true] %s47
      %53 = dma.hbm_to_vmem [thread:$0]  %s4, 1024, %s48, [#allocation6], 64, 64, 4
    $region21: #{actor_forward.1} parent=1 // pred_fallthru
      _
    // Predicated region
    $region22: #{actor_forward.1} parent=1 // pred_check
      _
    $region23: #{actor_forward.1} parent=1 // pred_check_branch
      %55 = sbr.rel (0) target = $region25
    $region24: #{actor_forward.1} parent=1 // pred_region
      _
    $region25: #{actor_forward.1} parent=1 // pred_fallthru
      _
    // Predicated region
    $region26: #{actor_forward.1} parent=1 // pred_check
      _
    $region27: #{actor_forward.1} parent=1 // pred_check_branch
      %57 = sbr.rel (0) target = $region29
    $region28: #{actor_forward.1} parent=1 // pred_region
      %58 = dma.done [#allocation3], 1024
    $region29: #{actor_forward.1} parent=1 // pred_fallthru
      _
    // Predicated region
    $region30: #{actor_forward.1} parent=1 // pred_check
      _
    $region31: #{actor_forward.1} parent=1 // pred_check_branch
      %60 = sbr.rel (0) target = $region33
    $region32: #{actor_forward.1} parent=1 // pred_region
      %61 = dma.done [#allocation6], 1024
    $region33: #{actor_forward.1} parent=1 // pred_fallthru
      _
    // Predicated region
    $region34: #{actor_forward.1} parent=1 // pred_check
      _
    $region35: #{actor_forward.1} parent=1 // pred_check_branch
      %63 = sbr.rel (0) target = $region37
    $region36: #{actor_forward.1} parent=1 // pred_region
      %64 = dma.done [#allocation6], 1024
    $region37: #{actor_forward.1} parent=1 // pred_fallthru
      _
    %v66 = vld [vmem:[%s0] sm:$0xf]
    %v67 = vld [vmem:[#allocation2] sm:$0xf]
    %v68 = vld [vmem:[#allocation2 + $0x4] sm:$0xf]
    %v69 = vld [vmem:[#allocation2 + $0x8] sm:$0xf]
    %v70 = vld [vmem:[#allocation2 + $0xc] sm:$0xf]
    %v71 = vld [vmem:[#allocation2 + $0x10] sm:$0xf]
    %v72 = vld [vmem:[#allocation2 + $0x14] sm:$0xf]
    %v73 = vld [vmem:[#allocation2 + $0x18] sm:$0xf]
    %v74 = vld [vmem:[#allocation2 + $0x1c] sm:$0xf]
    %v75 = vld [vmem:[#allocation2 + $0x20] sm:$0xf]
    %v76 = vld [vmem:[#allocation2 + $0x24] sm:$0xf]
    %v77 = vld [vmem:[#allocation2 + $0x28] sm:$0xf]
    %v78 = vld [vmem:[#allocation2 + $0x2c] sm:$0xf]
    %v79 = vld [vmem:[#allocation2 + $0x30] sm:$0xf]
    %v80 = vld [vmem:[#allocation2 + $0x34] sm:$0xf]
    %v81 = vld [vmem:[#allocation2 + $0x38] sm:$0xf]
    %v82 = vld [vmem:[#allocation2 + $0x3c] sm:$0xf]
    %v83 = vld [vmem:[%s2] sm:$0x7]
    %v84 = vlaneseq
    %v85 = vshrl.u32 %v84, 7
    %v86 = vsub.s32 0, %v85
    %v87 = vrot.slane %v83, %v86
    %v104 = vunpack.c.l.b16 %v67
    %v105 = vunpack.c.l.b16 %v68
    %v106 = vunpack.c.l.b16 %v69
    %v107 = vunpack.c.l.b16 %v70
    %v108 = vunpack.c.l.b16 %v71
    %v109 = vunpack.c.l.b16 %v72
    %v110 = vunpack.c.l.b16 %v73
    %v111 = vunpack.c.l.b16 %v74
    %v112 = vunpack.c.l.b16 %v75
    %v113 = vunpack.c.l.b16 %v76
    %v114 = vunpack.c.l.b16 %v77
    %v115 = vunpack.c.l.b16 %v78
    %v116 = vunpack.c.l.b16 %v79
    %v117 = vunpack.c.l.b16 %v80
    %v118 = vunpack.c.l.b16 %v81
    %v119 = vunpack.c.l.b16 %v82
    %v120 = vpack.c.b16 %v105, %v104
    %v121 = vpack.c.b16 %v107, %v106
    %v122 = vpack.c.b16 %v109, %v108
    %v123 = vpack.c.b16 %v111, %v110
    %v124 = vpack.c.b16 %v113, %v112
    %v125 = vpack.c.b16 %v115, %v114
    %v126 = vpack.c.b16 %v117, %v116
    %v127 = vpack.c.b16 %v119, %v118
    %136 = vmatprep.subr.bf16.mxu0 0
    %137 = vmatpush1.bf16.msra.mxu0 %v120
    %138 = vmatprep.subr.bf16.mxu0 0
    %139 = vmatpush1.bf16.msra.mxu0 %v121
    %140 = vmatprep.subr.bf16.mxu0 0
    %141 = vmatpush1.bf16.msra.mxu0 %v122
    %142 = vmatprep.subr.bf16.mxu0 0
    %143 = vmatpush1.bf16.msra.mxu0 %v123
    %144 = vmatprep.subr.bf16.mxu0 0
    %145 = vmatpush1.bf16.msra.mxu0 %v124
    %146 = vmatprep.subr.bf16.mxu0 0
    %147 = vmatpush1.bf16.msra.mxu0 %v125
    %148 = vmatprep.subr.bf16.mxu0 0
    %149 = vmatpush1.bf16.msra.mxu0 %v126
    %150 = vmatprep.subr.bf16.mxu0 0
    %151 = vmatpush1.bf16.msra.mxu0 %v127
    %152 = vmatprep.subr.bf16.mxu0 0
    %153 = vmatpush1.bf16.msra.mxu0 0
    %154 = vmatprep.subr.bf16.mxu0 0
    %155 = vmatpush1.bf16.msra.mxu0 0
    %156 = vmatprep.subr.bf16.mxu0 0
    %157 = vmatpush1.bf16.msra.mxu0 0
    %158 = vmatprep.subr.bf16.mxu0 0
    %159 = vmatpush1.bf16.msra.mxu0 0
    %160 = vmatprep.subr.bf16.mxu0 0
    %161 = vmatpush1.bf16.msra.mxu0 0
    %162 = vmatprep.subr.bf16.mxu0 0
    %163 = vmatpush1.bf16.msra.mxu0 0
    %164 = vmatprep.subr.bf16.mxu0 0
    %165 = vmatpush1.bf16.msra.mxu0 0
    %166 = vmatprep.subr.bf16.mxu0 0
    %167 = vmatpush1.bf16.msra.mxu0 0
    %168 = vmatprep.mubr.bf16.mxu0 0
    %169 = vmatmul.mubr.bf16.gmra.mrb[0].mxu0 %v66
    %v170 = vpop.f32.mrb[0].mxu0
    %v171 = vadd.f32 %v87, %v170
    %v172 = vpop.f32.mrb[0].mxu0
    %v173 = vpop.f32.mrb[0].mxu0
    %v174 = vpop.f32.mrb[0].mxu0
    %175 = vdwg.mxu0
    %v176 = vmax.f32 %v171, 0.0
    %v177 = vrot.slane %v176, 4
    %v178 = vadd.f32 %v176, %v177
    %v179 = vrot.slane %v178, 2
    %v180 = vadd.f32 %v178, %v179
    %v181 = vrot.slane %v180, 1
    %v182 = vadd.f32 %v180, %v181
    %v183 = vmul.f32 %v176, %v176
    %v184 = vrot.slane %v183, 4
    %v185 = vadd.f32 %v183, %v184
    %v186 = vrot.slane %v185, 2
    %v187 = vadd.f32 %v185, %v186
    %v188 = vrot.slane %v187, 1
    %v189 = vadd.f32 %v187, %v188
    %v190 = vmul.f32 %v182, 0.125
    %v191 = vmul.f32 %v189, 0.125
    %v192 = vmul.f32 %v190, %v190
    %v193 = vsub.f32 %v191, %v192
    %v194 = vmax.f32 %v193, 0.0
    %v195 = vadd.f32 %v194, 1e-05
    %v196 = vrsqrt.pop %v195
    %v197 = vsub.f32 %v176, %v190
    %v198 = vmul.f32 %v197, %v196
    %v199 = vlaneseq
    %v200 = vshrl.u32 %v199, 7
    %v201 = vsub.s32 1, %v200
    %v202 = vrot.slane %v83, %v201
    %v203 = vmul.f32 %v202, %v198
    %v204 = vlaneseq
    %v205 = vshrl.u32 %v204, 7
    %v206 = vsub.s32 2, %v205
    %v207 = vrot.slane %v83, %v206
    %v208 = vadd.f32 %v203, %v207
    %v209 = vpack.c.bf16 %v208, %v208
    %v210 = vld [vmem:[#allocation5] sm:$0xf]
    %v211 = vld [vmem:[#allocation5 + $0x4] sm:$0xf]
    %v212 = vld [vmem:[#allocation5 + $0x8] sm:$0xf]
    %v213 = vld [vmem:[#allocation5 + $0xc] sm:$0xf]
    %v214 = vld [vmem:[#allocation5 + $0x10] sm:$0xf]
    %v215 = vld [vmem:[#allocation5 + $0x14] sm:$0xf]
    %v216 = vld [vmem:[#allocation5 + $0x18] sm:$0xf]
    %v217 = vld [vmem:[#allocation5 + $0x1c] sm:$0xf]
    %v218 = vld [vmem:[#allocation5 + $0x20] sm:$0xf]
    %v219 = vld [vmem:[#allocation5 + $0x24] sm:$0xf]
    %v220 = vld [vmem:[#allocation5 + $0x28] sm:$0xf]
    %v221 = vld [vmem:[#allocation5 + $0x2c] sm:$0xf]
    %v222 = vld [vmem:[#allocation5 + $0x30] sm:$0xf]
    %v223 = vld [vmem:[#allocation5 + $0x34] sm:$0xf]
    %v224 = vld [vmem:[#allocation5 + $0x38] sm:$0xf]
    %v225 = vld [vmem:[#allocation5 + $0x3c] sm:$0xf]
    %v226 = vld [vmem:[%s5] sm:$0x1]
    %v227 = vlaneseq
    %v228 = vshrl.u32 %v227, 7
    %v229 = vsub.s32 0, %v228
    %v230 = vrot.slane %v226, %v229
    %v247 = vunpack.c.l.b16 %v210
    %v248 = vunpack.c.l.b16 %v211
    %v249 = vunpack.c.l.b16 %v212
    %v250 = vunpack.c.l.b16 %v213
    %v251 = vunpack.c.l.b16 %v214
    %v252 = vunpack.c.l.b16 %v215
    %v253 = vunpack.c.l.b16 %v216
    %v254 = vunpack.c.l.b16 %v217
    %v255 = vunpack.c.l.b16 %v218
    %v256 = vunpack.c.l.b16 %v219
    %v257 = vunpack.c.l.b16 %v220
    %v258 = vunpack.c.l.b16 %v221
    %v259 = vunpack.c.l.b16 %v222
    %v260 = vunpack.c.l.b16 %v223
    %v261 = vunpack.c.l.b16 %v224
    %v262 = vunpack.c.l.b16 %v225
    %v263 = vpack.c.b16 %v248, %v247
    %v264 = vpack.c.b16 %v250, %v249
    %v265 = vpack.c.b16 %v252, %v251
    %v266 = vpack.c.b16 %v254, %v253
    %v267 = vpack.c.b16 %v256, %v255
    %v268 = vpack.c.b16 %v258, %v257
    %v269 = vpack.c.b16 %v260, %v259
    %v270 = vpack.c.b16 %v262, %v261
    %279 = vmatprep.subr.bf16.mxu0 0
    %280 = vmatpush1.bf16.msra.mxu0 %v263
    %281 = vmatprep.subr.bf16.mxu0 0
    %282 = vmatpush1.bf16.msra.mxu0 %v264
    %283 = vmatprep.subr.bf16.mxu0 0
    %284 = vmatpush1.bf16.msra.mxu0 %v265
    %285 = vmatprep.subr.bf16.mxu0 0
    %286 = vmatpush1.bf16.msra.mxu0 %v266
    %287 = vmatprep.subr.bf16.mxu0 0
    %288 = vmatpush1.bf16.msra.mxu0 %v267
    %289 = vmatprep.subr.bf16.mxu0 0
    %290 = vmatpush1.bf16.msra.mxu0 %v268
    %291 = vmatprep.subr.bf16.mxu0 0
    %292 = vmatpush1.bf16.msra.mxu0 %v269
    %293 = vmatprep.subr.bf16.mxu0 0
    %294 = vmatpush1.bf16.msra.mxu0 %v270
    %295 = vmatprep.subr.bf16.mxu0 0
    %296 = vmatpush1.bf16.msra.mxu0 0
    %297 = vmatprep.subr.bf16.mxu0 0
    %298 = vmatpush1.bf16.msra.mxu0 0
    %299 = vmatprep.subr.bf16.mxu0 0
    %300 = vmatpush1.bf16.msra.mxu0 0
    %301 = vmatprep.subr.bf16.mxu0 0
    %302 = vmatpush1.bf16.msra.mxu0 0
    %303 = vmatprep.subr.bf16.mxu0 0
    %304 = vmatpush1.bf16.msra.mxu0 0
    %305 = vmatprep.subr.bf16.mxu0 0
    %306 = vmatpush1.bf16.msra.mxu0 0
    %307 = vmatprep.subr.bf16.mxu0 0
    %308 = vmatpush1.bf16.msra.mxu0 0
    %309 = vmatprep.subr.bf16.mxu0 0
    %310 = vmatpush1.bf16.msra.mxu0 0
    %311 = vmatprep.mubr.bf16.mxu0 0
    %312 = vmatmul.mubr.bf16.gmra.mrb[0].mxu0 %v209
    %v313 = vpop.f32.mrb[0].mxu0
    %v314 = vadd.f32 %v230, %v313
    %v315 = vpop.f32.mrb[0].mxu0
    %v316 = vpop.f32.mrb[0].mxu0
    %v317 = vpop.f32.mrb[0].mxu0
    %318 = vdwg.mxu0
    %v319 = vmax.f32 %v314, 0.0
    %v320 = vpack.c.bf16 %v319, %v319
    %v321 = vld [vmem:[#allocation7] sm:$0xf]
    %v322 = vld [vmem:[#allocation7 + $0x4] sm:$0xf]
    %v323 = vld [vmem:[#allocation7 + $0x8] sm:$0xf]
    %v324 = vld [vmem:[#allocation7 + $0xc] sm:$0xf]
    %v325 = vld [vmem:[#allocation7 + $0x10] sm:$0xf]
    %v326 = vld [vmem:[#allocation7 + $0x14] sm:$0xf]
    %v327 = vld [vmem:[#allocation7 + $0x18] sm:$0xf]
    %v328 = vld [vmem:[#allocation7 + $0x1c] sm:$0xf]
    %v329 = vld [vmem:[#allocation7 + $0x20] sm:$0xf]
    %v330 = vld [vmem:[#allocation7 + $0x24] sm:$0xf]
    %v331 = vld [vmem:[#allocation7 + $0x28] sm:$0xf]
    %v332 = vld [vmem:[#allocation7 + $0x2c] sm:$0xf]
    %v333 = vld [vmem:[#allocation7 + $0x30] sm:$0xf]
    %v334 = vld [vmem:[#allocation7 + $0x34] sm:$0xf]
    %v335 = vld [vmem:[#allocation7 + $0x38] sm:$0xf]
    %v336 = vld [vmem:[#allocation7 + $0x3c] sm:$0xf]
    %v337 = vld [vmem:[%s5 + $0x1] sm:$0x1]
    %v338 = vlaneseq
    %v339 = vshrl.u32 %v338, 7
    %v340 = vsub.s32 0, %v339
    %v341 = vrot.slane %v337, %v340
    %v358 = vunpack.c.l.b16 %v321
    %v359 = vunpack.c.l.b16 %v322
    %v360 = vunpack.c.l.b16 %v323
    %v361 = vunpack.c.l.b16 %v324
    %v362 = vunpack.c.l.b16 %v325
    %v363 = vunpack.c.l.b16 %v326
    %v364 = vunpack.c.l.b16 %v327
    %v365 = vunpack.c.l.b16 %v328
    %v366 = vunpack.c.l.b16 %v329
    %v367 = vunpack.c.l.b16 %v330
    %v368 = vunpack.c.l.b16 %v331
    %v369 = vunpack.c.l.b16 %v332
    %v370 = vunpack.c.l.b16 %v333
    %v371 = vunpack.c.l.b16 %v334
    %v372 = vunpack.c.l.b16 %v335
    %v373 = vunpack.c.l.b16 %v336
    %v374 = vpack.c.b16 %v359, %v358
    %v375 = vpack.c.b16 %v361, %v360
    %v376 = vpack.c.b16 %v363, %v362
    %v377 = vpack.c.b16 %v365, %v364
    %v378 = vpack.c.b16 %v367, %v366
    %v379 = vpack.c.b16 %v369, %v368
    %v380 = vpack.c.b16 %v371, %v370
    %v381 = vpack.c.b16 %v373, %v372
    %390 = vmatprep.subr.bf16.mxu0 0
    %391 = vmatpush1.bf16.msra.mxu0 %v374
    %392 = vmatprep.subr.bf16.mxu0 0
    %393 = vmatpush1.bf16.msra.mxu0 %v375
    %394 = vmatprep.subr.bf16.mxu0 0
    %395 = vmatpush1.bf16.msra.mxu0 %v376
    %396 = vmatprep.subr.bf16.mxu0 0
    %397 = vmatpush1.bf16.msra.mxu0 %v377
    %398 = vmatprep.subr.bf16.mxu0 0
    %399 = vmatpush1.bf16.msra.mxu0 %v378
    %400 = vmatprep.subr.bf16.mxu0 0
    %401 = vmatpush1.bf16.msra.mxu0 %v379
    %402 = vmatprep.subr.bf16.mxu0 0
    %403 = vmatpush1.bf16.msra.mxu0 %v380
    %404 = vmatprep.subr.bf16.mxu0 0
    %405 = vmatpush1.bf16.msra.mxu0 %v381
    %406 = vmatprep.subr.bf16.mxu0 0
    %407 = vmatpush1.bf16.msra.mxu0 0
    %408 = vmatprep.subr.bf16.mxu0 0
    %409 = vmatpush1.bf16.msra.mxu0 0
    %410 = vmatprep.subr.bf16.mxu0 0
    %411 = vmatpush1.bf16.msra.mxu0 0
    %412 = vmatprep.subr.bf16.mxu0 0
    %413 = vmatpush1.bf16.msra.mxu0 0
    %414 = vmatprep.subr.bf16.mxu0 0
    %415 = vmatpush1.bf16.msra.mxu0 0
    %416 = vmatprep.subr.bf16.mxu0 0
    %417 = vmatpush1.bf16.msra.mxu0 0
    %418 = vmatprep.subr.bf16.mxu0 0
    %419 = vmatpush1.bf16.msra.mxu0 0
    %420 = vmatprep.subr.bf16.mxu0 0
    %421 = vmatpush1.bf16.msra.mxu0 0
    %422 = vmatprep.mubr.bf16.mxu0 0
    %423 = vmatmul.mubr.bf16.gmra.mrb[0].mxu0 %v320
    %v424 = vpop.f32.mrb[0].mxu0
    %v425 = vadd.f32 %v341, %v424
    %v426 = vpop.f32.mrb[0].mxu0
    %v427 = vpop.f32.mrb[0].mxu0
    %v428 = vpop.f32.mrb[0].mxu0
    %429 = vdwg.mxu0
    %v430 = vtanh.pop %v425
    %431 = vst [vmem:[#allocation8] sm:$0xff] %v430
    // Predicated region
    $region38: #{actor_forward.1} parent=1 // pred_check
      _
    $region39: #{actor_forward.1} parent=1 // pred_check_branch
      %433 = sbr.rel (0) target = $region41
    $region40: #{actor_forward.1} parent=1 // pred_region
      %s435 = ssub.s32 128, 128
      %436 = vsyncadd [#allocation4], %s435
      %s438 = sshll.u32 [#allocation8], 4
      %s439 = int_to_ptr.vmem [resolvable:$true] %s438
      %441 = dma.vmem_to_hbm [thread:$0]  %s439, 128, %s6, [#allocation4]
    $region41: #{actor_forward.1} parent=1 // pred_fallthru
      _
    // Predicated region
    $region42: #{actor_forward.1} parent=1 // pred_check
      _
    $region43: #{actor_forward.1} parent=1 // pred_check_branch
      %443 = sbr.rel (0) target = $region45
    $region44: #{actor_forward.1} parent=1 // pred_region
      %444 = dma.done [#allocation4], 128
    $region45: #{actor_forward.1} parent=1 // pred_fallthru
      _
    %445 = vsyncpa [#allocation3], 1
    %446 = vsyncpa [#allocation6], 1
    %447 = vsyncpa [#allocation4], 1

</llo_original>
